<compile_context>
chip_gen: v5e
topology: v5e:2x2
jax: 0.10.0
libtpu: 0.0.40
codegen_flags: <defaults>
</compile_context>

<pallas_src>
import functools
import math

import jax
import jax.numpy as jnp
from jax.experimental import pallas as pl
from jax.experimental.pallas import tpu as pltpu

_NUM_CORES = 2   # leading "parallel" grid axis (v7x dual TC; neutral on 1-TC chips)
_SUBLANES = 8


def _round_up(x, m):
    return ((x + m - 1) // m) * m


def _per_elem_bce(p, y, binary_labels):
    # PyTorch BCELoss clamps each log term at -100 BEFORE multiplying by the
    # (possibly zero) label weight.  Do NOT reorder: padding elements
    # (pred=1, label=1) rely on 0 * (-100) == 0; 0 * (-inf) would be NaN.
    if binary_labels:
        # Hard {0,1}-label fast path: one EUP log per element instead of two.
        x = jnp.where(y > 0.5, p, 1.0 - p)
        return -jnp.maximum(jnp.log(x), -100.0)
    log_p = jnp.maximum(jnp.log(p), -100.0)
    log_1mp = jnp.maximum(jnp.log(1.0 - p), -100.0)
    return -(y * log_p + (1.0 - y) * log_1mp)


def _bce_kernel(pred_ref, label_ref, out_ref, *, num_tiles, tiles_per_core,
                binary_labels):
    c = pl.program_id(0)   # parallel (core) axis
    i = pl.program_id(1)   # arbitrary (reduction) axis

    @pl.when(i == 0)
    def _init():
        out_ref[...] = jnp.zeros_like(out_ref)

    tile_idx = c * tiles_per_core + i

    @pl.when(tile_idx < num_tiles)   # skip phantom tiles when num_tiles is odd
    def _accumulate():
        p = pred_ref[...].astype(jnp.float32)
        y = label_ref[...].astype(jnp.float32)
        per_elem = _per_elem_bce(p, y, binary_labels)
        tile_rows, _ = per_elem.shape
        # Fold the tile down to an (8, lanes) partial using vreg-aligned
        # static slices: pure VALU adds across vregs, no XLU, no big scratch.
        folded = per_elem[0:_SUBLANES, :]
        for g in range(1, tile_rows // _SUBLANES):
            folded = folded + per_elem[g * _SUBLANES:(g + 1) * _SUBLANES, :]
        out_ref[...] += folded


def bce_loss(output, label, *, lane_target=2048, row_target=512,
             assume_binary_labels=False, min_kernel_elems=65536,
             force_kernel=False):
    """Mean binary cross-entropy with the semantics of nn.BCELoss()(output, label)."""
    assert output.shape == label.shape
    assert lane_target % 128 == 0 and row_target % _SUBLANES == 0

    total = int(math.prod(output.shape))

    if total < min_kernel_elems and not force_kernel:
        # Tiny inputs: pad/reshape + kernel launch is pure overhead.
        p = output.reshape(-1).astype(jnp.float32)
        y = label.reshape(-1).astype(jnp.float32)
        return jnp.sum(_per_elem_bce(p, y, assume_binary_labels)) * (1.0 / total)

    # Lane-dense slab: lanes a multiple of 128, rows a multiple of 8.
    lanes = lane_target
    while lanes > 128 and total < lanes * _SUBLANES and (lanes // 2) % 128 == 0:
        lanes //= 2
    rows = pl.cdiv(total, lanes)
    rows_padded = _round_up(rows, _SUBLANES)          # minimal padding

    # Largest row tile <= row_target that divides rows_padded (exact grid, no
    # partial blocks; worst case tile_rows == 8 which always divides).
    tile_rows = min(row_target, rows_padded)
    while rows_padded % tile_rows:
        tile_rows -= _SUBLANES
    num_tiles = rows_padded // tile_rows
    tiles_per_core = pl.cdiv(num_tiles, _NUM_CORES)

    pred_flat = output.reshape(-1)
    lab_flat = label.reshape(-1)
    pad = rows_padded * lanes - total
    if pad:
        # (pred=1, label=1) contributes exactly 0 to the BCE sum (clamp is
        # applied before the multiply -- see _per_elem_bce).  Padding only to
        # the next multiple of 8 rows keeps this copy small.
        pred_flat = jnp.concatenate(
            [pred_flat, jnp.ones((pad,), pred_flat.dtype)])
        lab_flat = jnp.concatenate(
            [lab_flat, jnp.ones((pad,), lab_flat.dtype)])
    pred2d = pred_flat.reshape(rows_padded, lanes)
    lab2d = lab_flat.reshape(rows_padded, lanes)

    kernel = functools.partial(
        _bce_kernel, num_tiles=num_tiles, tiles_per_core=tiles_per_core,
        binary_labels=assume_binary_labels)

    def in_map(c, i):
        # Clamp phantom tiles (num_tiles odd) onto a valid block; the kernel
        # skips their contribution via pl.when.
        return (jnp.minimum(c * tiles_per_core + i, num_tiles - 1), 0)

    bytes_per_elem = (jnp.dtype(output.dtype).itemsize
                      + jnp.dtype(label.dtype).itemsize)
    padded_total = rows_padded * lanes
    out_rows = _NUM_CORES * _SUBLANES
    n_logs = 1 if assume_binary_labels else 2

    partials = pl.pallas_call(
        kernel,
        out_shape=jax.ShapeDtypeStruct((out_rows, lanes), jnp.float32),
        grid_spec=pltpu.PrefetchScalarGridSpec(
            num_scalar_prefetch=0,
            grid=(_NUM_CORES, tiles_per_core),
            in_specs=[
                pl.BlockSpec((tile_rows, lanes), in_map),
                pl.BlockSpec((tile_rows, lanes), in_map),
            ],
            # Output block index depends only on the core axis -> it stays
            # resident in VMEM across the reduction axis (accumulator).
            out_specs=pl.BlockSpec((_SUBLANES, lanes), lambda c, i: (c, 0)),
        ),
        compiler_params=pltpu.CompilerParams(
            dimension_semantics=("parallel", "arbitrary"),
            vmem_limit_bytes=48 * 1024 * 1024,   # safe on v7x's 64 MiB VMEM
        ),
        cost_estimate=pl.CostEstimate(
            flops=5 * padded_total,
            transcendentals=n_logs * padded_total,
            bytes_accessed=padded_total * bytes_per_elem + out_rows * lanes * 4,
        ),
    )(pred2d, lab2d)

    # Tiny (16 x lanes) cross-lane reduce + mean scaling in XLA.
    return jnp.sum(partials) * (1.0 / total)


def _bce_ref(output, label):
    o = output.astype(jnp.float32)
    y = label.astype(jnp.float32)
    return jnp.mean(
        -(y * jnp.maximum(jnp.log(o), -100.0)
          + (1.0 - y) * jnp.maximum(jnp.log(1.0 - o), -100.0)))


if __name__ == "__main__":
    key = jax.random.PRNGKey(0)

    def make_inputs(k, shape):
        k1, k2 = jax.random.split(k)
        logits = jax.random.normal(k1, shape, dtype=jnp.float32)
        out = jax.nn.sigmoid(logits)  # BCELoss expects values in (0, 1)
        lab = jax.random.bernoulli(k2, p=0.5, shape=shape).astype(jnp.float32)
        return out, lab

    k0, k1, k2 = jax.random.split(key, 3)

    # 1) Small GAN-discriminator-like NCHW shape -> small-input jnp fallback.
    out_a, lab_a = make_inputs(k0, (2, 4, 16, 16))
    ref_a = _bce_ref(out_a, lab_a)
    loss_a = bce_loss(out_a, lab_a)
    jax.block_until_ready(loss_a)
    assert jnp.allclose(loss_a, ref_a, rtol=1e-5, atol=1e-5), (loss_a, ref_a)

    # 2) Same data, forced kernel with tiny tiles -> multi-tile dual-core grid.
    loss_b = bce_loss(out_a, lab_a, force_kernel=True,
                      lane_target=128, row_target=8)
    jax.block_until_ready(loss_b)
    assert jnp.allclose(loss_b, ref_a, rtol=1e-5, atol=1e-5), (loss_b, ref_a)

    # 3) Non-128-multiple element count -> zero-loss padding path.
    out_c, lab_c = make_inputs(k1, (2, 3, 17, 19))
    ref_c = _bce_ref(out_c, lab_c)
    loss_c = bce_loss(out_c, lab_c, force_kernel=True,
                      lane_target=128, row_target=8)
    jax.block_until_ready(loss_c)
    assert jnp.allclose(loss_c, ref_c, rtol=1e-5, atol=1e-5), (loss_c, ref_c)

    # 4) Larger input -> auto kernel path; both cores get real tiles.
    out_d, lab_d = make_inputs(k2, (4, 4, 64, 64))   # 65536 elements
    ref_d = _bce_ref(out_d, lab_d)
    loss_d = bce_loss(out_d, lab_d, row_target=16)
    jax.block_until_ready(loss_d)
    assert jnp.allclose(loss_d, ref_d, rtol=1e-5, atol=1e-5), (loss_d, ref_d)

    # 5) Hard-{0,1}-label fast path (one EUP log per element).
    loss_e = bce_loss(out_d, lab_d, row_target=16, assume_binary_labels=True)
    jax.block_until_ready(loss_e)
    assert jnp.allclose(loss_e, ref_d, rtol=1e-5, atol=1e-5), (loss_e, ref_d)

    print("KERNEL_OK")
</pallas_src>

<mosaic_0001>
module attributes {stable_mosaic.version = 11 : i64} {
  func.func @_bce_kernel(%arg0: i32, %arg1: i32, %arg2: memref<8x128xf32, #tpu.memory_space<vmem>>, %arg3: memref<8x128xf32, #tpu.memory_space<vmem>>, %arg4: memref<8x128xf32, #tpu.memory_space<vmem>>) attributes {dimension_semantics = [#tpu.dimension_semantics<parallel>, #tpu.dimension_semantics<arbitrary>], iteration_bounds = array<i64: 2, 1>, scalar_prefetch = 0 : i64, scratch_operands = 0 : i64, tpu.core_type = #tpu.core_type<tc>, window_params = [{transform_indices = @transform_0, window_bounds = array<i64: 8, 128>}, {transform_indices = @transform_1, window_bounds = array<i64: 8, 128>}, {transform_indices = @transform_2, window_bounds = array<i64: 8, 128>}]} {
    %c0_i32 = arith.constant 0 : i32
    %0 = arith.cmpi eq, %arg1, %c0_i32 : i32
    %1 = arith.extui %0 : i1 to i32
    %c0_i32_0 = arith.constant 0 : i32
    %2 = arith.cmpi ne, %1, %c0_i32_0 : i32
    scf.if %2 {
      %cst = arith.constant 0.000000e+00 : f32
      %8 = vector.broadcast %cst : f32 to vector<8x128xf32>
      %c0 = arith.constant 0 : index
      %c0_2 = arith.constant 0 : index
      %9 = vector.load %arg4[%c0, %c0_2] : memref<8x128xf32, #tpu.memory_space<vmem>>, vector<8x128xf32>
      tpu.vector_store %arg4[%c0, %c0_2], %8 {strides = array<i32>} : memref<8x128xf32, #tpu.memory_space<vmem>>, vector<8x128xf32>,
    } else {
    }
    %c1_i32 = arith.constant 1 : i32
    %3 = arith.muli %arg0, %c1_i32 : i32
    %4 = arith.addi %3, %arg1 : i32
    %c2_i32 = arith.constant 2 : i32
    %5 = arith.cmpi slt, %4, %c2_i32 : i32
    %6 = arith.extui %5 : i1 to i32
    %c0_i32_1 = arith.constant 0 : i32
    %7 = arith.cmpi ne, %6, %c0_i32_1 : i32
    scf.if %7 {
      %c0 = arith.constant 0 : index
      %c0_2 = arith.constant 0 : index
      %8 = vector.load %arg2[%c0, %c0_2] : memref<8x128xf32, #tpu.memory_space<vmem>>, vector<8x128xf32>
      %c0_3 = arith.constant 0 : index
      %c0_4 = arith.constant 0 : index
      %9 = vector.load %arg3[%c0_3, %c0_4] : memref<8x128xf32, #tpu.memory_space<vmem>>, vector<8x128xf32>
      %10 = math.log %8 : vector<8x128xf32>
      %cst = arith.constant -1.000000e+02 : f32
      %11 = vector.broadcast %cst : f32 to vector<8x128xf32>
      %12 = arith.maximumf %10, %11 : vector<8x128xf32>
      %cst_5 = arith.constant 1.000000e+00 : f32
      %13 = vector.broadcast %cst_5 : f32 to vector<8x128xf32>
      %14 = arith.subf %13, %8 : vector<8x128xf32>
      %15 = math.log %14 : vector<8x128xf32>
      %cst_6 = arith.constant -1.000000e+02 : f32
      %16 = vector.broadcast %cst_6 : f32 to vector<8x128xf32>
      %17 = arith.maximumf %15, %16 : vector<8x128xf32>
      %18 = arith.mulf %9, %12 : vector<8x128xf32>
      %cst_7 = arith.constant 1.000000e+00 : f32
      %19 = vector.broadcast %cst_7 : f32 to vector<8x128xf32>
      %20 = arith.subf %19, %9 : vector<8x128xf32>
      %21 = arith.mulf %20, %17 : vector<8x128xf32>
      %22 = arith.addf %18, %21 : vector<8x128xf32>
      %cst_8 = arith.constant 0.000000e+00 : f32
      %23 = vector.broadcast %cst_8 : f32 to vector<8x128xf32>
      %24 = arith.subf %23, %22 : vector<8x128xf32>
      %c0_9 = arith.constant 0 : index
      %c0_10 = arith.constant 0 : index
      %25 = vector.load %arg4[%c0_9, %c0_10] : memref<8x128xf32, #tpu.memory_space<vmem>>, vector<8x128xf32>
      %26 = arith.addf %25, %24 : vector<8x128xf32>
      %c0_11 = arith.constant 0 : index
      %c0_12 = arith.constant 0 : index
      %27 = vector.load %arg4[%c0_11, %c0_12] : memref<8x128xf32, #tpu.memory_space<vmem>>, vector<8x128xf32>
      tpu.vector_store %arg4[%c0_11, %c0_12], %26 {strides = array<i32>} : memref<8x128xf32, #tpu.memory_space<vmem>>, vector<8x128xf32>,
    } else {
    }
    return
  }
  func.func @transform_0(%arg0: i32, %arg1: i32) -> (i32, i32) {
    %c1_i32 = arith.constant 1 : i32
    %0 = arith.muli %arg0, %c1_i32 : i32
    %1 = arith.addi %0, %arg1 : i32
    %c1_i32_0 = arith.constant 1 : i32
    %2 = arith.minsi %1, %c1_i32_0 : i32
    %c0_i32 = arith.constant 0 : i32
    %c0_i32_1 = arith.constant 0 : i32
    return %2, %c0_i32 : i32, i32
  }
  func.func @transform_1(%arg0: i32, %arg1: i32) -> (i32, i32) {
    %c1_i32 = arith.constant 1 : i32
    %0 = arith.muli %arg0, %c1_i32 : i32
    %1 = arith.addi %0, %arg1 : i32
    %c1_i32_0 = arith.constant 1 : i32
    %2 = arith.minsi %1, %c1_i32_0 : i32
    %c0_i32 = arith.constant 0 : i32
    %c0_i32_1 = arith.constant 0 : i32
    return %2, %c0_i32 : i32, i32
  }
  func.func @transform_2(%arg0: i32, %arg1: i32) -> (i32, i32) {
    %c0_i32 = arith.constant 0 : i32
    %c0_i32_0 = arith.constant 0 : i32
    return %arg0, %c0_i32 : i32, i32
  }
}

</mosaic_0001>

<llo_original>
// kernel: tpu_custom_call.1
$region0: #{tpu_custom_call.1}
  #allocation0 [shape = 'u32[]', space=smem, size = 0x4, offset = 0x4, fixed_abs, tag = 'smem constant byte address 0x4 - core index']
  #allocation1 [shape = 'u32[72,128]{1,0:T(1,128)}', space=vmem, size = 0x9000, scoped, tag = 'internal scratch']
  %s0 = inlined_call_operand.hbm [shape: f32[16,128], index: 0, kind: input, shape index: {}]
  %s1 = inlined_call_operand.hbm [shape: f32[16,128], index: 1, kind: input, shape index: {}]
  %s2 = inlined_call_operand.hbm [shape: f32[16,128], index: 2, kind: output, shape index: {}]
  %s3 = sld [smem:[#allocation0]]
  $region57: #{tpu_custom_call.1} parent=0
    _
  %s5 = ssub.s32 1, %s3
  %s6 = scalar_select 0, %s5, %s3
  $region1: #{tpu_custom_call.1} parent=0
    #allocation2 [shape = 'u8[8192]{0}', space=vmem, size = 0x2000, scoped, tag = 'input window, operand 0']
    #allocation3 [shape = 's32[2]{0}', space=sflag, size = 0x8, scoped, tag = 'scoped memory for tpu_custom_call.1']
    #allocation4 [shape = 's32[2]{0}', space=sflag, size = 0x8, scoped, tag = 'scoped memory for tpu_custom_call.1']
    #allocation5 [shape = 'u8[8192]{0}', space=vmem, size = 0x2000, scoped, tag = 'input window, operand 1']
    #allocation6 [shape = 's32[2]{0}', space=sflag, size = 0x8, scoped, tag = 'scoped memory for tpu_custom_call.1']
    #allocation7 [shape = 'u8[8192]{0}', space=vmem, size = 0x2000, scoped, tag = 'output window, operand 0']
    %7 = vsyncpa [#allocation3], 0
    %s8 = scalar_lea.sflag [#allocation3], 1
    %9 = vsyncpa %s8, 0
    %10 = vsyncpa [#allocation6], 0
    %s11 = scalar_lea.sflag [#allocation6], 1
    %12 = vsyncpa %s11, 0
    %13 = vsyncpa [#allocation4], 0
    %s14 = scalar_lea.sflag [#allocation4], 1
    %15 = vsyncpa %s14, 0
    loop: start=0, step=1, limit=4
    $region2: #{tpu_custom_call.1} parent=1 // loop_pre_header
      _
    $region3: #{tpu_custom_call.1} parent=1 // loop_header
      %s17 = sphi 0, %s21
      %p18 = scmp.ge.s32.totalorder %s17, 4
      %s24 = sphi 0, %s36
      %s25 = sphi 0, %s32
      %s26 = sphi 0, %s24
      %s27 = sphi 0, %s25
      %s28 = sphi 0, %s26
      %s29 = sphi 0, %s27
      %s45 = sphi 0, %s47
      %s48 = sphi 0, %s45
      %s49 = sphi 0, %s48
      %s65 = sphi 0, %s49
      %s77 = sphi 0, %s79
      %s80 = sphi 0, %s77
      %s81 = sphi 0, %s80
      %s97 = sphi 0, %s81
      %s103 = sphi 0, %s105
      %s106 = sphi 0, %s103
      %s107 = sphi 0, %s106
      %s123 = sphi 0, %s107
    $region4: #{tpu_custom_call.1} parent=1 // loop_header_branch
      %20 = sbr.rel (%p18) target = $region8
    $region5: #{tpu_custom_call.1} parent=1 // loop_body
      %s22 = ssub.s32 %s17, 1
      %s23 = ssub.s32 %s17, 2
      %s30 = sadd.s32 1, %s25
      %p31 = scmp.ge.s32.totalorder %s30, 1
      %s32 = scalar_select %p31, 0, %s30
      %s33 = sadd.s32 1, %s24
      %s34 = scalar_select %p31, %s33, %s24
      %p35 = scmp.ge.s32.totalorder %s34, 2
      %s36 = scalar_select %p35, 0, %s34
      %s37 = sadd.s32 %s24, %s25
      %p38 = scmp.lt.s32.totalorder %s37, 1
      %s39 = scalar_select %p38, %s37, 1
      %s40 = sadd.s32 %s36, %s32
      %p41 = scmp.lt.s32.totalorder %s40, 1
      %s42 = scalar_select %p41, %s40, 1
      %s43 = ssub.s32 %s39, %s42
      %p44 = scmp.eq.s32.totalorder %s43, 0
      %s46 = sadd.s32 %s45, 1
      %s47 = scalar_select %p44, %s45, %s46
      %p50 = pneg %p44
      %p51 = scmp.eq.s32.totalorder %s17, 1
      %p52 = por %p50, %p51
      %p53 = scmp.ne.s32.totalorder %s45, %s48
      %p54 = scmp.eq.s32.totalorder %s17, 0
      %p55 = por %p53, %p54
      %p56 = scmp.ne.s32.totalorder %s45, %s48
      %p57 = scmp.eq.s32.totalorder %s22, 1
      %p58 = por %p56, %p57
      %p59 = scmp.ne.s32.totalorder %s48, %s49
      %p60 = scmp.eq.s32.totalorder %s22, 0
      %p61 = por %p59, %p60
      %p62 = scmp.ne.s32.totalorder %s48, %s49
      %p63 = scmp.eq.s32.totalorder %s23, 1
      %p64 = por %p62, %p63
      %p66 = scmp.ne.s32.totalorder %s49, %s65
      %p67 = scmp.eq.s32.totalorder %s23, 0
      %p68 = por %p66, %p67
      %s69 = sadd.s32 %s24, %s25
      %p70 = scmp.lt.s32.totalorder %s69, 1
      %s71 = scalar_select %p70, %s69, 1
      %s72 = sadd.s32 %s36, %s32
      %p73 = scmp.lt.s32.totalorder %s72, 1
      %s74 = scalar_select %p73, %s72, 1
      %s75 = ssub.s32 %s71, %s74
      %p76 = scmp.eq.s32.totalorder %s75, 0
      %s78 = sadd.s32 %s77, 1
      %s79 = scalar_select %p76, %s77, %s78
      %p82 = pneg %p76
      %p83 = scmp.eq.s32.totalorder %s17, 1
      %p84 = por %p82, %p83
      %p85 = scmp.ne.s32.totalorder %s77, %s80
      %p86 = scmp.eq.s32.totalorder %s17, 0
      %p87 = por %p85, %p86
      %p88 = scmp.ne.s32.totalorder %s77, %s80
      %p89 = scmp.eq.s32.totalorder %s22, 1
      %p90 = por %p88, %p89
      %p91 = scmp.ne.s32.totalorder %s80, %s81
      %p92 = scmp.eq.s32.totalorder %s22, 0
      %p93 = por %p91, %p92
      %p94 = scmp.ne.s32.totalorder %s80, %s81
      %p95 = scmp.eq.s32.totalorder %s23, 1
      %p96 = por %p94, %p95
      %p98 = scmp.ne.s32.totalorder %s81, %s97
      %p99 = scmp.eq.s32.totalorder %s23, 0
      %p100 = por %p98, %p99
      %s101 = ssub.s32 %s24, %s36
      %p102 = scmp.eq.s32.totalorder %s101, 0
      %s104 = sadd.s32 %s103, 1
      %s105 = scalar_select %p102, %s103, %s104
      %p108 = pneg %p102
      %p109 = scmp.eq.s32.totalorder %s17, 1
      %p110 = por %p108, %p109
      %p111 = scmp.ne.s32.totalorder %s103, %s106
      %p112 = scmp.eq.s32.totalorder %s17, 0
      %p113 = por %p111, %p112
      %p114 = scmp.ne.s32.totalorder %s103, %s106
      %p115 = scmp.eq.s32.totalorder %s22, 1
      %p116 = por %p114, %p115
      %p117 = scmp.ne.s32.totalorder %s106, %s107
      %p118 = scmp.eq.s32.totalorder %s22, 0
      %p119 = por %p117, %p118
      %p120 = scmp.ne.s32.totalorder %s106, %s107
      %p121 = scmp.eq.s32.totalorder %s23, 1
      %p122 = por %p120, %p121
      %p124 = scmp.ne.s32.totalorder %s107, %s123
      %p125 = scmp.eq.s32.totalorder %s23, 0
      %p126 = por %p124, %p125
      %p127 = scmp.le.s32.totalorder 1, %s17
      %p128 = scmp.lt.s32.totalorder %s17, 3
      %p129 = pnand %p127, %p128
      %p130 = pneg %p129
      // Predicated region
      $region9: #{tpu_custom_call.1} parent=5 // pred_check
        _
      $region10: #{tpu_custom_call.1} parent=5 // pred_check_branch
        %132 = sbr.rel (%p129) target = $region12
      $region11: #{tpu_custom_call.1} parent=5 // pred_region
        %s133 = ssub.s32 %s17, 1
      $region12: #{tpu_custom_call.1} parent=5 // pred_fallthru
        _
      %p134 = scmp.lt.s32.totalorder %s17, 2
      // Predicated region
      $region13: #{tpu_custom_call.1} parent=5 // pred_check
        %p135 = pneg %p134
      $region14: #{tpu_custom_call.1} parent=5 // pred_check_branch
        %137 = sbr.rel (%p135) target = $region16
      $region15: #{tpu_custom_call.1} parent=5 // pred_region
        // Predicated region
        $region17: #{tpu_custom_call.1} parent=15 // pred_check
          %p138 = pneg %p55
        $region18: #{tpu_custom_call.1} parent=15 // pred_check_branch
          %140 = sbr.rel (%p138) target = $region20
        $region19: #{tpu_custom_call.1} parent=15 // pred_region
          %s141 = sand.u32 %s45, 1
          %s142 = scalar_lea.sflag [#allocation3], %s141
          %s143 = sand.u32 %s45, 1
          %s144 = smul.addr %s143, 8
          %s145 = scalar_lea.vmem [#allocation2], %s144
          %s146 = sadd.s32 %s24, %s25
          %p147 = scmp.lt.s32.totalorder %s146, 1
          %s148 = scalar_select %p147, %s146, 1
          %150 = vsyncadd %s142, 0
          %s151 = smul.addr %s148, 8
          %s152 = scalar_lea.hbm %s0, %s151
          %s154 = sshll.u32 %s152, 4
          %s155 = int_to_ptr.hbm [resolvable:$true] %s154
          %s156 = sshll.u32 %s145, 4
          %s157 = int_to_ptr.vmem [resolvable:$true] %s156
          %159 = dma.hbm_to_vmem [thread:$0]  %s155, 128, %s157, %s142
        $region20: #{tpu_custom_call.1} parent=15 // pred_fallthru
          _
        // Predicated region
        $region21: #{tpu_custom_call.1} parent=15 // pred_check
          %p160 = pneg %p87
        $region22: #{tpu_custom_call.1} parent=15 // pred_check_branch
          %162 = sbr.rel (%p160) target = $region24
        $region23: #{tpu_custom_call.1} parent=15 // pred_region
          %s163 = sand.u32 %s77, 1
          %s164 = scalar_lea.sflag [#allocation6], %s163
          %s165 = sand.u32 %s77, 1
          %s166 = smul.addr %s165, 8
          %s167 = scalar_lea.vmem [#allocation5], %s166
          %s168 = sadd.s32 %s24, %s25
          %p169 = scmp.lt.s32.totalorder %s168, 1
          %s170 = scalar_select %p169, %s168, 1
          %172 = vsyncadd %s164, 0
          %s173 = smul.addr %s170, 8
          %s174 = scalar_lea.hbm %s1, %s173
          %s176 = sshll.u32 %s174, 4
          %s177 = int_to_ptr.hbm [resolvable:$true] %s176
          %s178 = sshll.u32 %s167, 4
          %s179 = int_to_ptr.vmem [resolvable:$true] %s178
          %181 = dma.hbm_to_vmem [thread:$0]  %s177, 128, %s179, %s164
        $region24: #{tpu_custom_call.1} parent=15 // pred_fallthru
          _
      $region16: #{tpu_custom_call.1} parent=5 // pred_fallthru
        _
      %p182 = scmp.le.s32.totalorder 1, %s17
      %p183 = scmp.lt.s32.totalorder %s17, 3
      %p184 = pnand %p182, %p183
      %p185 = pneg %p184
      // Predicated region
      $region25: #{tpu_custom_call.1} parent=5 // pred_check
        _
      $region26: #{tpu_custom_call.1} parent=5 // pred_check_branch
        %187 = sbr.rel (%p184) target = $region28
      $region27: #{tpu_custom_call.1} parent=5 // pred_region
        %s188 = ssub.s32 %s17, 1
        %s189 = sand.u32 %s48, 1
        %s190 = scalar_lea.sflag [#allocation3], %s189
        %s191 = sand.u32 %s48, 1
        %s192 = smul.addr %s191, 8
        %s193 = scalar_lea.vmem [#allocation2], %s192
        // Predicated region
        $region29: #{tpu_custom_call.1} parent=27 // pred_check
          %p194 = pneg %p61
        $region30: #{tpu_custom_call.1} parent=27 // pred_check_branch
          %196 = sbr.rel (%p194) target = $region32
        $region31: #{tpu_custom_call.1} parent=27 // pred_region
          %198 = dma.done %s190, 128
        $region32: #{tpu_custom_call.1} parent=27 // pred_fallthru
          _
        %s199 = sand.u32 %s80, 1
        %s200 = scalar_lea.sflag [#allocation6], %s199
        %s201 = sand.u32 %s80, 1
        %s202 = smul.addr %s201, 8
        %s203 = scalar_lea.vmem [#allocation5], %s202
        // Predicated region
        $region33: #{tpu_custom_call.1} parent=27 // pred_check
          %p204 = pneg %p93
        $region34: #{tpu_custom_call.1} parent=27 // pred_check_branch
          %206 = sbr.rel (%p204) target = $region36
        $region35: #{tpu_custom_call.1} parent=27 // pred_region
          %208 = dma.done %s200, 128
        $region36: #{tpu_custom_call.1} parent=27 // pred_fallthru
          _
        %s209 = sand.u32 %s48, 1
        %s210 = scalar_lea.sflag [#allocation3], %s209
        %s211 = sand.u32 %s48, 1
        %s212 = smul.addr %s211, 8
        %s213 = scalar_lea.vmem [#allocation2], %s212
        %p214 = pneg %p61
        %p215 = pneg %p58
        %s216 = sand.u32 %s80, 1
        %s217 = scalar_lea.sflag [#allocation6], %s216
        %s218 = sand.u32 %s80, 1
        %s219 = smul.addr %s218, 8
        %s220 = scalar_lea.vmem [#allocation5], %s219
        %p221 = pneg %p93
        %p222 = pneg %p90
        %p223 = pneg %p119
        %p224 = pneg %p116
        %s225 = sand.u32 %s106, 1
        %s226 = scalar_lea.sflag [#allocation4], %s225
        %s227 = sand.u32 %s106, 1
        %s228 = smul.addr %s227, 8
        %s229 = scalar_lea.vmem [#allocation7], %s228
        %s230 = sadd.s32 %s26, %s27
        %p231 = scmp.lt.s32.totalorder %s230, 1
        %s232 = scalar_select %p231, %s230, 1
        %s233 = sadd.s32 %s26, %s27
        %p234 = scmp.lt.s32.totalorder %s233, 1
        %s235 = scalar_select %p234, %s233, 1
        %p236 = scmp.eq.s32.totalorder %s27, 0
        // Predicated region
        $region37: #{tpu_custom_call.1} parent=27 // pred_check
          %p237 = pneg %p236
        $region38: #{tpu_custom_call.1} parent=27 // pred_check_branch
          %239 = sbr.rel (%p237) target = $region40
        $region39: #{tpu_custom_call.1} parent=27 // pred_region
          %240 = vst [vmem:[%s229] sm:$0xff] 0.0
        $region40: #{tpu_custom_call.1} parent=27 // pred_fallthru
          _
        %s241 = sadd.s32 %s26, %s27
        %p242 = scmp.lt.s32.totalorder %s241, 2
        // Predicated region
        $region41: #{tpu_custom_call.1} parent=27 // pred_check
          %p243 = pneg %p242
        $region42: #{tpu_custom_call.1} parent=27 // pred_check_branch
          %245 = sbr.rel (%p243) target = $region44
        $region43: #{tpu_custom_call.1} parent=27 // pred_region
          %v246 = vld [vmem:[%s193] sm:$0xff]
          %v247 = vld [vmem:[%s203] sm:$0xff]
          %v248 = vlog2.pop %v246
          %v249 = vmul.f32 %v248, 0.6931472
          %v250 = vmax.f32 %v249, -100.0
          %v251 = vsub.f32 1.0, %v246
          %v252 = vlog2.pop %v251
          %v253 = vmul.f32 %v252, 0.6931472
          %v254 = vmax.f32 %v253, -100.0
          %v255 = vmul.f32 %v247, %v250
          %v256 = vsub.f32 1.0, %v247
          %v257 = vmul.f32 %v256, %v254
          %v258 = vadd.f32 %v255, %v257
          %v259 = vsub.f32 0.0, %v258
          %v260 = vld [vmem:[%s229] sm:$0xff]
          %v261 = vadd.f32 %v260, %v259
          %262 = vst [vmem:[%s229] sm:$0xff] %v261
        $region44: #{tpu_custom_call.1} parent=27 // pred_fallthru
          _
        %s263 = sand.u32 %s106, 1
        %s264 = scalar_lea.sflag [#allocation4], %s263
        %s265 = sand.u32 %s106, 1
        %s266 = smul.addr %s265, 8
        %s267 = scalar_lea.vmem [#allocation7], %s266
        // Predicated region
        $region45: #{tpu_custom_call.1} parent=27 // pred_check
          %p268 = pneg %p116
        $region46: #{tpu_custom_call.1} parent=27 // pred_check_branch
          %270 = sbr.rel (%p268) target = $region48
        $region47: #{tpu_custom_call.1} parent=27 // pred_region
          %272 = vsyncadd %s264, 0
          %s273 = smul.addr %s26, 8
          %s274 = scalar_lea.hbm %s2, %s273
          %s276 = sshll.u32 %s267, 4
          %s277 = int_to_ptr.vmem [resolvable:$true] %s276
          %s278 = sshll.u32 %s274, 4
          %s279 = int_to_ptr.hbm [resolvable:$true] %s278
          %281 = dma.vmem_to_hbm [thread:$0]  %s277, 128, %s279, %s264
        $region48: #{tpu_custom_call.1} parent=27 // pred_fallthru
          _
      $region28: #{tpu_custom_call.1} parent=5 // pred_fallthru
        _
      %p282 = scmp.le.s32.totalorder 2, %s17
      // Predicated region
      $region49: #{tpu_custom_call.1} parent=5 // pred_check
        %p283 = pneg %p282
      $region50: #{tpu_custom_call.1} parent=5 // pred_check_branch
        %285 = sbr.rel (%p283) target = $region52
      $region51: #{tpu_custom_call.1} parent=5 // pred_region
        %s286 = ssub.s32 %s17, 2
        // Predicated region
        $region53: #{tpu_custom_call.1} parent=51 // pred_check
          %p287 = pneg %p122
        $region54: #{tpu_custom_call.1} parent=51 // pred_check_branch
          %289 = sbr.rel (%p287) target = $region56
        $region55: #{tpu_custom_call.1} parent=51 // pred_region
          %s290 = sand.u32 %s107, 1
          %s291 = scalar_lea.sflag [#allocation4], %s290
          %s292 = sand.u32 %s107, 1
          %s293 = smul.addr %s292, 8
          %s294 = scalar_lea.vmem [#allocation7], %s293
          %296 = dma.done %s291, 128
        $region56: #{tpu_custom_call.1} parent=51 // pred_fallthru
          _
      $region52: #{tpu_custom_call.1} parent=5 // pred_fallthru
        _
    $region6: #{tpu_custom_call.1} parent=1 // loop_footer
      %s21 = sadd.s32 1, %s17
    $region7: #{tpu_custom_call.1} parent=1 // loop_footer_branch
      %16 = sbr.rel target = $region3
    $region8: #{tpu_custom_call.1} parent=1 // loop_exit
      _
    %297 = vsyncpa [#allocation3], 1
    %s298 = scalar_lea.sflag [#allocation3], 1
    %299 = vsyncpa %s298, 1
    %300 = vsyncpa [#allocation6], 1
    %s301 = scalar_lea.sflag [#allocation6], 1
    %302 = vsyncpa %s301, 1
    %303 = vsyncpa [#allocation4], 1
    %s304 = scalar_lea.sflag [#allocation4], 1
    %305 = vsyncpa %s304, 1

</llo_original>
